<compile_context>
chip_gen: v7x
topology: tpu7x:2x2x1
jax: 0.10.0
libtpu: 0.0.40
codegen_flags: <defaults>
</compile_context>

<pallas_src>
import functools

import jax
import jax.numpy as jnp
from jax.experimental import pallas as pl
from jax.experimental.pallas import tpu as pltpu

LANE = 128


def _round_up(n, m=LANE):
    return ((n + m - 1) // m) * m


def _pad2d(a, rows, cols):
    """Zero-pad a 2-D array up to (rows, cols)."""
    return jnp.pad(a, ((0, rows - a.shape[0]), (0, cols - a.shape[1])))


# --------------------------------------------------------------------------
# One-time parameter preparation (hoisted out of the forward pass).
# --------------------------------------------------------------------------
def prepare_params(params):
    """Pad to lane multiples, cast weights to bf16, pack into slabs.

    Returns (slabs, layout):
      slabs  = (w_slab_0, ..., w_slab_{k-1}, bias_slab)  device arrays
      layout = per-layer static metadata (slab_idx, row_offset, din_p, dout_p)

    Weights are grouped by padded output width so packing adds no extra bytes.
    Pad regions are exactly zero, which keeps padded activation columns at
    zero through every layer (required for correctness of the final slice).
    """
    n_layers = len(params) // 2

    padded = []
    for i in range(n_layers):
        w = params[2 * i]
        din_p, dout_p = _round_up(w.shape[0]), _round_up(w.shape[1])
        padded.append((_pad2d(w.astype(jnp.bfloat16), din_p, dout_p),
                       din_p, dout_p))

    widths = sorted({dout_p for _, _, dout_p in padded})
    slab_parts = {w: [] for w in widths}
    layout = []
    for wpad, din_p, dout_p in padded:
        si = widths.index(dout_p)
        off = sum(p.shape[0] for p in slab_parts[dout_p])   # multiple of 128
        slab_parts[dout_p].append(wpad)
        layout.append((si, off, din_p, dout_p))
    w_slabs = [jnp.concatenate(slab_parts[w], axis=0) for w in widths]

    # Bias slab: one f32 row per layer, lane-padded to the widest layer.
    max_w = max(widths)
    b_rows = _round_up(n_layers, 8)
    b_slab = jnp.zeros((b_rows, max_w), jnp.float32)
    for i in range(n_layers):
        b = jnp.asarray(params[2 * i + 1], jnp.float32).reshape(-1)
        b_slab = b_slab.at[i, : b.shape[0]].set(b)

    return tuple(w_slabs) + (b_slab,), tuple(layout)


# --------------------------------------------------------------------------
# Kernel: whole MLP forward in one invocation (everything fits in VMEM).
# --------------------------------------------------------------------------
def mlp_kernel(layout, x_ref, *refs):
    *w_refs, b_ref, out_ref = refs
    n_layers = len(layout)

    h = x_ref[...].astype(jnp.bfloat16)            # (B, Fp) bf16
    logits = None
    for li, (si, off, din_p, dout_p) in enumerate(layout):
        w = w_refs[si][pl.ds(off, din_p), :]       # static, tile-aligned view
        z = jnp.dot(h, w, preferred_element_type=jnp.float32)
        z = z + b_ref[pl.ds(li, 1), pl.ds(0, dout_p)]      # f32 bias add
        if li < n_layers - 1:
            # ReLU in f32, downcast fused into the activation output.
            h = jnp.maximum(z, 0.0).astype(jnp.bfloat16)
        else:
            logits = z                             # (B, Cp) f32

    # nn.Softmax(dim=0): normalize across the batch dimension (per column).
    # Padded columns are all-zero logits -> finite values that are sliced off
    # outside the kernel; they never contaminate real columns since the
    # reduction is per-column.
    m = jnp.max(logits, axis=0, keepdims=True)
    e = jnp.exp(logits - m)
    denom = jnp.sum(e, axis=0, keepdims=True)
    out_ref[...] = e * pl.reciprocal(denom, approx=True)


# --------------------------------------------------------------------------
# Forward wrapper.
# --------------------------------------------------------------------------
@functools.partial(jax.jit, static_argnames=("layout", "num_classes"))
def mlp_forward(x, slabs, layout, num_classes):
    """x: (B, F) float32; slabs/layout from prepare_params.

    Returns softmax(dim=0) probabilities of shape (B, num_classes), float32.
    """
    B = x.shape[0]
    Fp = layout[0][2]      # padded input width of layer 1
    Cp = layout[-1][3]     # padded output width of the final fc

    xp = _pad2d(x.astype(jnp.float32), B, Fp)      # tiny per-call pad

    def full_spec(shape):
        nd = len(shape)
        return pl.BlockSpec(shape, lambda i, _nd=nd: (0,) * _nd)

    out_p = pl.pallas_call(
        functools.partial(mlp_kernel, layout),
        out_shape=jax.ShapeDtypeStruct((B, Cp), jnp.float32),
        grid=(1,),
        in_specs=[full_spec(xp.shape)] + [full_spec(s.shape) for s in slabs],
        out_specs=full_spec((B, Cp)),
        compiler_params=pltpu.CompilerParams(
            dimension_semantics=("arbitrary",)),
    )(xp, *slabs)

    return out_p[:, :num_classes]


# --------------------------------------------------------------------------
# Synthetic parameters + plain-JAX reference.
# --------------------------------------------------------------------------
def init_params(key, num_features, num_classes):
    """Deterministic synthetic parameters (weights stored as (in, out), f32)."""
    dims = [(num_features, 100), (100, 200), (200, 500),
            (500, 200), (200, 100), (100, num_classes)]
    params = []
    for i, (din, dout) in enumerate(dims):
        kw, kb = jax.random.split(jax.random.fold_in(key, i))
        scale = 1.0 / jnp.sqrt(jnp.float32(din))
        w = jax.random.uniform(kw, (din, dout), jnp.float32, -scale, scale)
        b = jax.random.uniform(kb, (1, dout), jnp.float32, -scale, scale)
        params += [w, b]
    return params


def mlp_reference(x, params):
    """Plain-JAX reference with the same bf16-weight / f32-accumulate math."""
    n_layers = len(params) // 2
    h = x.astype(jnp.float32)
    logits = None
    for i in range(n_layers):
        w = params[2 * i].astype(jnp.bfloat16)
        b = jnp.asarray(params[2 * i + 1], jnp.float32).reshape(1, -1)
        z = jnp.dot(h.astype(jnp.bfloat16), w,
                    preferred_element_type=jnp.float32) + b
        if i < n_layers - 1:
            h = jnp.maximum(z, 0.0)
        else:
            logits = z
    return jax.nn.softmax(logits, axis=0)   # dim=0 softmax, like the torch model


if __name__ == "__main__":
    num_features = 32
    num_classes = 10
    batch = 8

    key = jax.random.PRNGKey(0)
    kx, kp = jax.random.split(key)
    x = jax.random.normal(kx, (batch, num_features), jnp.float32)
    params = init_params(kp, num_features, num_classes)

    # One-time prep (pad + bf16 cast + slab packing) -- NOT per forward call.
    slabs, layout = prepare_params(params)

    out = jax.block_until_ready(mlp_forward(x, slabs, layout, num_classes))
    ref = mlp_reference(x, params)

    assert out.shape == (batch, num_classes)
    assert out.dtype == jnp.float32
    # Tolerance covers the approx (EUP) reciprocal in the softmax epilogue.
    assert jnp.allclose(out, ref, atol=2e-3, rtol=2e-3), "mismatch vs reference"
    # softmax(dim=0): each class column sums to 1 over the batch.
    assert jnp.allclose(jnp.sum(out, axis=0), 1.0, atol=2e-3)

    print("KERNEL_OK")
</pallas_src>

<mosaic_0001>
module attributes {stable_mosaic.version = 11 : i64} {
  func.func @mlp_kernel(%arg0: i32, %arg1: memref<8x128xf32, #tpu.memory_space<vmem>>, %arg2: memref<512x128xbf16, #tpu.memory_space<vmem>>, %arg3: memref<640x256xbf16, #tpu.memory_space<vmem>>, %arg4: memref<256x512xbf16, #tpu.memory_space<vmem>>, %arg5: memref<8x512xf32, #tpu.memory_space<vmem>>, %arg6: memref<8x128xf32, #tpu.memory_space<vmem>>) attributes {dimension_semantics = [#tpu.dimension_semantics<arbitrary>], iteration_bounds = array<i64: 1>, scalar_prefetch = 0 : i64, scratch_operands = 0 : i64, tpu.core_type = #tpu.core_type<tc>, window_params = [{pipeline_mode = #tpu.pipeline_mode<synchronous>, transform_indices = @transform_0, window_bounds = array<i64: 8, 128>}, {pipeline_mode = #tpu.pipeline_mode<synchronous>, transform_indices = @transform_1, window_bounds = array<i64: 512, 128>}, {pipeline_mode = #tpu.pipeline_mode<synchronous>, transform_indices = @transform_2, window_bounds = array<i64: 640, 256>}, {pipeline_mode = #tpu.pipeline_mode<synchronous>, transform_indices = @transform_3, window_bounds = array<i64: 256, 512>}, {pipeline_mode = #tpu.pipeline_mode<synchronous>, transform_indices = @transform_4, window_bounds = array<i64: 8, 512>}, {pipeline_mode = #tpu.pipeline_mode<synchronous>, transform_indices = @transform_5, window_bounds = array<i64: 8, 128>}]} {
    %c0 = arith.constant 0 : index
    %c0_0 = arith.constant 0 : index
    %0 = vector.load %arg1[%c0, %c0_0] : memref<8x128xf32, #tpu.memory_space<vmem>>, vector<8x128xf32>
    %1 = arith.truncf %0 : vector<8x128xf32> to vector<8x128xbf16>
    %c0_1 = arith.constant 0 : index
    %c0_2 = arith.constant 0 : index
    %2 = vector.load %arg2[%c0_1, %c0_2] : memref<512x128xbf16, #tpu.memory_space<vmem>>, vector<128x128xbf16>
    %cst = arith.constant dense<0.000000e+00> : vector<8x128xf32>
    %3 = tpu.matmul %1, %2, %cst {dimension_numbers = #tpu.dot_dimension_numbers<[1], [0], [0], [1], [0, 0, 1, 1], [], []>} : vector<8x128xbf16>, vector<128x128xbf16>, vector<8x128xf32> -> vector<8x128xf32>
    %c0_3 = arith.constant 0 : index
    %c0_4 = arith.constant 0 : index
    %4 = vector.load %arg5[%c0_3, %c0_4] : memref<8x512xf32, #tpu.memory_space<vmem>>, vector<1x128xf32>
    %5 = vector.broadcast %4 : vector<1x128xf32> to vector<8x128xf32>
    %6 = arith.addf %3, %5 : vector<8x128xf32>
    %cst_5 = arith.constant 0.000000e+00 : f32
    %7 = vector.broadcast %cst_5 : f32 to vector<8x128xf32>
    %8 = arith.maximumf %6, %7 : vector<8x128xf32>
    %9 = arith.truncf %8 : vector<8x128xf32> to vector<8x128xbf16>
    %c0_6 = arith.constant 0 : index
    %c0_7 = arith.constant 0 : index
    %10 = vector.load %arg3[%c0_6, %c0_7] : memref<640x256xbf16, #tpu.memory_space<vmem>>, vector<128x256xbf16>
    %cst_8 = arith.constant dense<0.000000e+00> : vector<8x256xf32>
    %11 = tpu.matmul %9, %10, %cst_8 {dimension_numbers = #tpu.dot_dimension_numbers<[1], [0], [0], [1], [0, 0, 1, 1], [], []>} : vector<8x128xbf16>, vector<128x256xbf16>, vector<8x256xf32> -> vector<8x256xf32>
    %c1 = arith.constant 1 : index
    %c0_9 = arith.constant 0 : index
    %12 = vector.load %arg5[%c1, %c0_9] : memref<8x512xf32, #tpu.memory_space<vmem>>, vector<1x256xf32>
    %13 = vector.broadcast %12 : vector<1x256xf32> to vector<8x256xf32>
    %14 = arith.addf %11, %13 : vector<8x256xf32>
    %cst_10 = arith.constant 0.000000e+00 : f32
    %15 = vector.broadcast %cst_10 : f32 to vector<8x256xf32>
    %16 = arith.maximumf %14, %15 : vector<8x256xf32>
    %17 = arith.truncf %16 : vector<8x256xf32> to vector<8x256xbf16>
    %c0_11 = arith.constant 0 : index
    %c0_12 = arith.constant 0 : index
    %18 = vector.load %arg4[%c0_11, %c0_12] : memref<256x512xbf16, #tpu.memory_space<vmem>>, vector<256x512xbf16>
    %cst_13 = arith.constant dense<0.000000e+00> : vector<8x512xf32>
    %19 = tpu.matmul %17, %18, %cst_13 {dimension_numbers = #tpu.dot_dimension_numbers<[1], [0], [0], [1], [0, 0, 1, 1], [], []>} : vector<8x256xbf16>, vector<256x512xbf16>, vector<8x512xf32> -> vector<8x512xf32>
    %c2 = arith.constant 2 : index
    %c0_14 = arith.constant 0 : index
    %20 = vector.load %arg5[%c2, %c0_14] : memref<8x512xf32, #tpu.memory_space<vmem>>, vector<1x512xf32>
    %21 = vector.broadcast %20 : vector<1x512xf32> to vector<8x512xf32>
    %22 = arith.addf %19, %21 : vector<8x512xf32>
    %cst_15 = arith.constant 0.000000e+00 : f32
    %23 = vector.broadcast %cst_15 : f32 to vector<8x512xf32>
    %24 = arith.maximumf %22, %23 : vector<8x512xf32>
    %25 = arith.truncf %24 : vector<8x512xf32> to vector<8x512xbf16>
    %c128 = arith.constant 128 : index
    %c0_16 = arith.constant 0 : index
    %26 = vector.load %arg3[%c128, %c0_16] : memref<640x256xbf16, #tpu.memory_space<vmem>>, vector<512x256xbf16>
    %cst_17 = arith.constant dense<0.000000e+00> : vector<8x256xf32>
    %27 = tpu.matmul %25, %26, %cst_17 {dimension_numbers = #tpu.dot_dimension_numbers<[1], [0], [0], [1], [0, 0, 1, 1], [], []>} : vector<8x512xbf16>, vector<512x256xbf16>, vector<8x256xf32> -> vector<8x256xf32>
    %c3 = arith.constant 3 : index
    %c0_18 = arith.constant 0 : index
    %28 = vector.load %arg5[%c3, %c0_18] : memref<8x512xf32, #tpu.memory_space<vmem>>, vector<1x256xf32>
    %29 = vector.broadcast %28 : vector<1x256xf32> to vector<8x256xf32>
    %30 = arith.addf %27, %29 : vector<8x256xf32>
    %cst_19 = arith.constant 0.000000e+00 : f32
    %31 = vector.broadcast %cst_19 : f32 to vector<8x256xf32>
    %32 = arith.maximumf %30, %31 : vector<8x256xf32>
    %33 = arith.truncf %32 : vector<8x256xf32> to vector<8x256xbf16>
    %c128_20 = arith.constant 128 : index
    %c0_21 = arith.constant 0 : index
    %34 = vector.load %arg2[%c128_20, %c0_21] : memref<512x128xbf16, #tpu.memory_space<vmem>>, vector<256x128xbf16>
    %cst_22 = arith.constant dense<0.000000e+00> : vector<8x128xf32>
    %35 = tpu.matmul %33, %34, %cst_22 {dimension_numbers = #tpu.dot_dimension_numbers<[1], [0], [0], [1], [0, 0, 1, 1], [], []>} : vector<8x256xbf16>, vector<256x128xbf16>, vector<8x128xf32> -> vector<8x128xf32>
    %c4 = arith.constant 4 : index
    %c0_23 = arith.constant 0 : index
    %36 = vector.load %arg5[%c4, %c0_23] : memref<8x512xf32, #tpu.memory_space<vmem>>, vector<1x128xf32>
    %37 = vector.broadcast %36 : vector<1x128xf32> to vector<8x128xf32>
    %38 = arith.addf %35, %37 : vector<8x128xf32>
    %cst_24 = arith.constant 0.000000e+00 : f32
    %39 = vector.broadcast %cst_24 : f32 to vector<8x128xf32>
    %40 = arith.maximumf %38, %39 : vector<8x128xf32>
    %41 = arith.truncf %40 : vector<8x128xf32> to vector<8x128xbf16>
    %c384 = arith.constant 384 : index
    %c0_25 = arith.constant 0 : index
    %42 = vector.load %arg2[%c384, %c0_25] : memref<512x128xbf16, #tpu.memory_space<vmem>>, vector<128x128xbf16>
    %cst_26 = arith.constant dense<0.000000e+00> : vector<8x128xf32>
    %43 = tpu.matmul %41, %42, %cst_26 {dimension_numbers = #tpu.dot_dimension_numbers<[1], [0], [0], [1], [0, 0, 1, 1], [], []>} : vector<8x128xbf16>, vector<128x128xbf16>, vector<8x128xf32> -> vector<8x128xf32>
    %c5 = arith.constant 5 : index
    %c0_27 = arith.constant 0 : index
    %44 = vector.load %arg5[%c5, %c0_27] : memref<8x512xf32, #tpu.memory_space<vmem>>, vector<1x128xf32>
    %45 = vector.broadcast %44 : vector<1x128xf32> to vector<8x128xf32>
    %46 = arith.addf %43, %45 : vector<8x128xf32>
    %cst_28 = arith.constant dense<0xFF800000> : vector<128xf32>
    %47 = vector.multi_reduction <maximumf>, %46, %cst_28 [0] : vector<8x128xf32> to vector<128xf32>
    %48 = vector.shape_cast %47 : vector<128xf32> to vector<1x128xf32>
    %49 = vector.broadcast %48 : vector<1x128xf32> to vector<8x128xf32>
    %50 = arith.subf %46, %49 : vector<8x128xf32>
    %51 = math.exp %50 : vector<8x128xf32>
    %cst_29 = arith.constant dense<0.000000e+00> : vector<128xf32>
    %52 = vector.multi_reduction <add>, %51, %cst_29 [0] : vector<8x128xf32> to vector<128xf32>
    %53 = vector.shape_cast %52 : vector<128xf32> to vector<1x128xf32>
    %54 = tpu.reciprocal %53 {approx = true} : vector<1x128xf32> -> vector<1x128xf32>
    %55 = vector.broadcast %54 : vector<1x128xf32> to vector<8x128xf32>
    %56 = arith.mulf %51, %55 : vector<8x128xf32>
    %c0_30 = arith.constant 0 : index
    %c0_31 = arith.constant 0 : index
    %57 = vector.load %arg6[%c0_30, %c0_31] : memref<8x128xf32, #tpu.memory_space<vmem>>, vector<8x128xf32>
    tpu.vector_store %arg6[%c0_30, %c0_31], %56 {strides = array<i32>} : memref<8x128xf32, #tpu.memory_space<vmem>>, vector<8x128xf32>,
    return
  }
  func.func @transform_0(%arg0: i32) -> (i32, i32) {
    %c0_i32 = arith.constant 0 : i32
    %c0_i32_0 = arith.constant 0 : i32
    %c0_i32_1 = arith.constant 0 : i32
    return %c0_i32, %c0_i32_0 : i32, i32
  }
  func.func @transform_1(%arg0: i32) -> (i32, i32) {
    %c0_i32 = arith.constant 0 : i32
    %c0_i32_0 = arith.constant 0 : i32
    %c0_i32_1 = arith.constant 0 : i32
    return %c0_i32, %c0_i32_0 : i32, i32
  }
  func.func @transform_2(%arg0: i32) -> (i32, i32) {
    %c0_i32 = arith.constant 0 : i32
    %c0_i32_0 = arith.constant 0 : i32
    %c0_i32_1 = arith.constant 0 : i32
    return %c0_i32, %c0_i32_0 : i32, i32
  }
  func.func @transform_3(%arg0: i32) -> (i32, i32) {
    %c0_i32 = arith.constant 0 : i32
    %c0_i32_0 = arith.constant 0 : i32
    %c0_i32_1 = arith.constant 0 : i32
    return %c0_i32, %c0_i32_0 : i32, i32
  }
  func.func @transform_4(%arg0: i32) -> (i32, i32) {
    %c0_i32 = arith.constant 0 : i32
    %c0_i32_0 = arith.constant 0 : i32
    %c0_i32_1 = arith.constant 0 : i32
    return %c0_i32, %c0_i32_0 : i32, i32
  }
  func.func @transform_5(%arg0: i32) -> (i32, i32) {
    %c0_i32 = arith.constant 0 : i32
    %c0_i32_0 = arith.constant 0 : i32
    %c0_i32_1 = arith.constant 0 : i32
    return %c0_i32, %c0_i32_0 : i32, i32
  }
}

</mosaic_0001>

<llo_original>
// kernel: mlp_forward.1
$region0: #{mlp_forward.1}
  #allocation0 [shape = 'u32[]', space=smem, size = 0x4, offset = 0x4, fixed_abs, tag = 'smem constant byte address 0x4 - core index']
  #allocation1 [shape = 'u32[144,128]{1,0:T(1,128)}', space=vmem, size = 0x12000, scoped, tag = 'internal scratch']
  %s0 = inlined_call_operand.vmem [shape: f32[8,128], index: 0, kind: input, shape index: {}]
  %s1 = inlined_call_operand.hbm [shape: bf16[512,128], index: 1, kind: input, shape index: {}]
  %s2 = inlined_call_operand.hbm [shape: bf16[640,256], index: 2, kind: input, shape index: {}]
  %s3 = inlined_call_operand.hbm [shape: bf16[256,512], index: 3, kind: input, shape index: {}]
  %s4 = inlined_call_operand.vmem [shape: f32[8,512], index: 4, kind: input, shape index: {}]
  %s5 = inlined_call_operand.hbm [shape: f32[8,128], index: 5, kind: output, shape index: {}]
  %s6 = sld [smem:[#allocation0]]
  $region42: #{mlp_forward.1} parent=0
    _
  %s8 = ssub.s32 1, %s6
  %s9 = scalar_select 0, %s8, %s6
  $region1: #{mlp_forward.1} parent=0
    #allocation2 [shape = 'u8[131072]{0}', space=vmem, size = 0x20000, scoped, tag = 'input window, operand 1, single buffered']
    #allocation3 [shape = 's32[1]{0}', space=sflag, size = 0x4, scoped, tag = 'scoped memory for mlp_forward.1']
    #allocation4 [shape = 's32[1]{0}', space=sflag, size = 0x4, scoped, tag = 'scoped memory for mlp_forward.1']
    #allocation5 [shape = 'u8[327680]{0}', space=vmem, size = 0x50000, scoped, tag = 'input window, operand 2, single buffered']
    #allocation6 [shape = 's32[1]{0}', space=sflag, size = 0x4, scoped, tag = 'scoped memory for mlp_forward.1']
    #allocation7 [shape = 'u8[262144]{0}', space=vmem, size = 0x40000, scoped, tag = 'input window, operand 3, single buffered']
    #allocation8 [shape = 'u8[4096]{0}', space=vmem, size = 0x1000, scoped, tag = 'output window, operand 0, single buffered']
    %10 = vsyncpa [#allocation3], 0
    %11 = vsyncpa [#allocation6], 0
    %12 = vsyncpa [#allocation4], 0
    // Predicated region
    $region2: #{mlp_forward.1} parent=1 // pred_check
      _
    $region3: #{mlp_forward.1} parent=1 // pred_check_branch
      %14 = sbr.rel (0) target = $region5
    $region4: #{mlp_forward.1} parent=1 // pred_region
      _
    $region5: #{mlp_forward.1} parent=1 // pred_fallthru
      _
    // Predicated region
    $region6: #{mlp_forward.1} parent=1 // pred_check
      _
    $region7: #{mlp_forward.1} parent=1 // pred_check_branch
      %16 = sbr.rel (0) target = $region9
    $region8: #{mlp_forward.1} parent=1 // pred_region
      %s18 = ssub.s32 4096, 4096
      %19 = vsyncadd [#allocation3], %s18
      %s20 = sshll.u32 [#allocation2], 4
      %s21 = int_to_ptr.vmem [resolvable:$true] %s20
      %26 = dma.hbm_to_vmem [thread:$0]  %s1, 4096, %s21, [#allocation3], 64, 64, 4
    $region9: #{mlp_forward.1} parent=1 // pred_fallthru
      _
    // Predicated region
    $region10: #{mlp_forward.1} parent=1 // pred_check
      _
    $region11: #{mlp_forward.1} parent=1 // pred_check_branch
      %28 = sbr.rel (0) target = $region13
    $region12: #{mlp_forward.1} parent=1 // pred_region
      %s30 = ssub.s32 10240, 10240
      %31 = vsyncadd [#allocation6], %s30
      %s32 = sshll.u32 [#allocation5], 4
      %s33 = int_to_ptr.vmem [resolvable:$true] %s32
      %38 = dma.hbm_to_vmem [thread:$0]  %s2, 10240, %s33, [#allocation6], 128, 128, 8
    $region13: #{mlp_forward.1} parent=1 // pred_fallthru
      _
    // Predicated region
    $region14: #{mlp_forward.1} parent=1 // pred_check
      _
    $region15: #{mlp_forward.1} parent=1 // pred_check_branch
      %40 = sbr.rel (0) target = $region17
    $region16: #{mlp_forward.1} parent=1 // pred_region
      %s42 = ssub.s32 8192, 8192
      %43 = vsyncadd [#allocation6], %s42
      %s44 = sshll.u32 [#allocation7], 4
      %s45 = int_to_ptr.vmem [resolvable:$true] %s44
      %50 = dma.hbm_to_vmem [thread:$0]  %s3, 8192, %s45, [#allocation6], 256, 256, 16
    $region17: #{mlp_forward.1} parent=1 // pred_fallthru
      _
    // Predicated region
    $region18: #{mlp_forward.1} parent=1 // pred_check
      _
    $region19: #{mlp_forward.1} parent=1 // pred_check_branch
      %52 = sbr.rel (0) target = $region21
    $region20: #{mlp_forward.1} parent=1 // pred_region
      _
    $region21: #{mlp_forward.1} parent=1 // pred_fallthru
      _
    // Predicated region
    $region22: #{mlp_forward.1} parent=1 // pred_check
      _
    $region23: #{mlp_forward.1} parent=1 // pred_check_branch
      %54 = sbr.rel (0) target = $region25
    $region24: #{mlp_forward.1} parent=1 // pred_region
      %55 = dma.done [#allocation3], 4096
    $region25: #{mlp_forward.1} parent=1 // pred_fallthru
      _
    // Predicated region
    $region26: #{mlp_forward.1} parent=1 // pred_check
      _
    $region27: #{mlp_forward.1} parent=1 // pred_check_branch
      %57 = sbr.rel (0) target = $region29
    $region28: #{mlp_forward.1} parent=1 // pred_region
      %58 = dma.done [#allocation6], 10240
    $region29: #{mlp_forward.1} parent=1 // pred_fallthru
      _
    // Predicated region
    $region30: #{mlp_forward.1} parent=1 // pred_check
      _
    $region31: #{mlp_forward.1} parent=1 // pred_check_branch
      %60 = sbr.rel (0) target = $region33
    $region32: #{mlp_forward.1} parent=1 // pred_region
      %61 = dma.done [#allocation6], 8192
    $region33: #{mlp_forward.1} parent=1 // pred_fallthru
      _
    %v63 = vld [vmem:[%s0] sm:$0xff]
    %v64 = vpack.c.bf16 %v63, %v63
    %v65 = vld [vmem:[#allocation2] sm:$0xf]
    %v66 = vld [vmem:[#allocation2 + $0x4] sm:$0xf]
    %v67 = vld [vmem:[#allocation2 + $0x8] sm:$0xf]
    %v68 = vld [vmem:[#allocation2 + $0xc] sm:$0xf]
    %v69 = vld [vmem:[#allocation2 + $0x10] sm:$0xf]
    %v70 = vld [vmem:[#allocation2 + $0x14] sm:$0xf]
    %v71 = vld [vmem:[#allocation2 + $0x18] sm:$0xf]
    %v72 = vld [vmem:[#allocation2 + $0x1c] sm:$0xf]
    %v73 = vld [vmem:[#allocation2 + $0x20] sm:$0xf]
    %v74 = vld [vmem:[#allocation2 + $0x24] sm:$0xf]
    %v75 = vld [vmem:[#allocation2 + $0x28] sm:$0xf]
    %v76 = vld [vmem:[#allocation2 + $0x2c] sm:$0xf]
    %v77 = vld [vmem:[#allocation2 + $0x30] sm:$0xf]
    %v78 = vld [vmem:[#allocation2 + $0x34] sm:$0xf]
    %v79 = vld [vmem:[#allocation2 + $0x38] sm:$0xf]
    %v80 = vld [vmem:[#allocation2 + $0x3c] sm:$0xf]
    %v81 = vld [vmem:[%s4] ss:$0 sm:$0xff]
    %v98 = vunpack.c.l.b16 %v65
    %v99 = vunpack.c.l.b16 %v66
    %v100 = vunpack.c.l.b16 %v67
    %v101 = vunpack.c.l.b16 %v68
    %v102 = vunpack.c.l.b16 %v69
    %v103 = vunpack.c.l.b16 %v70
    %v104 = vunpack.c.l.b16 %v71
    %v105 = vunpack.c.l.b16 %v72
    %v106 = vunpack.c.l.b16 %v73
    %v107 = vunpack.c.l.b16 %v74
    %v108 = vunpack.c.l.b16 %v75
    %v109 = vunpack.c.l.b16 %v76
    %v110 = vunpack.c.l.b16 %v77
    %v111 = vunpack.c.l.b16 %v78
    %v112 = vunpack.c.l.b16 %v79
    %v113 = vunpack.c.l.b16 %v80
    %v114 = vpack.c.b16 %v99, %v98
    %v115 = vpack.c.b16 %v101, %v100
    %v116 = vpack.c.b16 %v103, %v102
    %v117 = vpack.c.b16 %v105, %v104
    %v118 = vpack.c.b16 %v107, %v106
    %v119 = vpack.c.b16 %v109, %v108
    %v120 = vpack.c.b16 %v111, %v110
    %v121 = vpack.c.b16 %v113, %v112
    %130 = vmatprep.subr.bf16.mxu0 0
    %131 = vmatpush1.bf16.msra.mxu0 %v114
    %132 = vmatprep.subr.bf16.mxu0 0
    %133 = vmatpush1.bf16.msra.mxu0 %v115
    %134 = vmatprep.subr.bf16.mxu0 0
    %135 = vmatpush1.bf16.msra.mxu0 %v116
    %136 = vmatprep.subr.bf16.mxu0 0
    %137 = vmatpush1.bf16.msra.mxu0 %v117
    %138 = vmatprep.subr.bf16.mxu0 0
    %139 = vmatpush1.bf16.msra.mxu0 %v118
    %140 = vmatprep.subr.bf16.mxu0 0
    %141 = vmatpush1.bf16.msra.mxu0 %v119
    %142 = vmatprep.subr.bf16.mxu0 0
    %143 = vmatpush1.bf16.msra.mxu0 %v120
    %144 = vmatprep.subr.bf16.mxu0 0
    %145 = vmatpush1.bf16.msra.mxu0 %v121
    %146 = vmatprep.subr.bf16.mxu0 0
    %147 = vmatpush1.bf16.msra.mxu0 0
    %148 = vmatprep.subr.bf16.mxu0 0
    %149 = vmatpush1.bf16.msra.mxu0 0
    %150 = vmatprep.subr.bf16.mxu0 0
    %151 = vmatpush1.bf16.msra.mxu0 0
    %152 = vmatprep.subr.bf16.mxu0 0
    %153 = vmatpush1.bf16.msra.mxu0 0
    %154 = vmatprep.subr.bf16.mxu0 0
    %155 = vmatpush1.bf16.msra.mxu0 0
    %156 = vmatprep.subr.bf16.mxu0 0
    %157 = vmatpush1.bf16.msra.mxu0 0
    %158 = vmatprep.subr.bf16.mxu0 0
    %159 = vmatpush1.bf16.msra.mxu0 0
    %160 = vmatprep.subr.bf16.mxu0 0
    %161 = vmatpush1.bf16.msra.mxu0 0
    %162 = vmatprep.mubr.bf16.mxu0 0
    %163 = vmatmul.mubr.bf16.gmra.mrb[0].mxu0 %v64
    %v164 = vpop.f32.mrb[0].mxu0
    %v165 = vadd.f32 %v81, %v164
    %v166 = vpop.f32.mrb[0].mxu0
    %v167 = vpop.f32.mrb[0].mxu0
    %v168 = vpop.f32.mrb[0].mxu0
    %169 = vdwg.mxu0
    %v170 = vmax.f32 %v165, 0.0
    %v171 = vpack.c.bf16 %v170, %v170
    %v172 = vld [vmem:[#allocation5] sm:$0xff]
    %v173 = vld [vmem:[#allocation5 + $0x8] sm:$0xff]
    %v174 = vld [vmem:[#allocation5 + $0x10] sm:$0xff]
    %v175 = vld [vmem:[#allocation5 + $0x18] sm:$0xff]
    %v176 = vld [vmem:[#allocation5 + $0x20] sm:$0xff]
    %v177 = vld [vmem:[#allocation5 + $0x28] sm:$0xff]
    %v178 = vld [vmem:[#allocation5 + $0x30] sm:$0xff]
    %v179 = vld [vmem:[#allocation5 + $0x38] sm:$0xff]
    %v180 = vld [vmem:[#allocation5 + $0x40] sm:$0xff]
    %v181 = vld [vmem:[#allocation5 + $0x48] sm:$0xff]
    %v182 = vld [vmem:[#allocation5 + $0x50] sm:$0xff]
    %v183 = vld [vmem:[#allocation5 + $0x58] sm:$0xff]
    %v184 = vld [vmem:[#allocation5 + $0x60] sm:$0xff]
    %v185 = vld [vmem:[#allocation5 + $0x68] sm:$0xff]
    %v186 = vld [vmem:[#allocation5 + $0x70] sm:$0xff]
    %v187 = vld [vmem:[#allocation5 + $0x78] sm:$0xff]
    %s188 = scalar_lea.vmem %s4, 1
    %v189 = vld [vmem:[%s188] ss:$8 sm:$0x3]
    %v191 = vlaneseq
    %v192 = vshrl.u32 %v191, 7
    %v193 = vsub.s32 0, %v192
    %v194 = vrot.slane %v189, %v193
    %v195 = vlaneseq
    %v196 = vshrl.u32 %v195, 7
    %v197 = vsub.s32 1, %v196
    %v198 = vrot.slane %v189, %v197
    %v217 = vunpack.c.l.b16 %v172
    %v218 = vunpack.c.h.b16 %v172
    %v219 = vunpack.c.l.b16 %v173
    %v220 = vunpack.c.h.b16 %v173
    %v221 = vunpack.c.l.b16 %v174
    %v222 = vunpack.c.h.b16 %v174
    %v223 = vunpack.c.l.b16 %v175
    %v224 = vunpack.c.h.b16 %v175
    %v225 = vunpack.c.l.b16 %v176
    %v226 = vunpack.c.h.b16 %v176
    %v227 = vunpack.c.l.b16 %v177
    %v228 = vunpack.c.h.b16 %v177
    %v229 = vunpack.c.l.b16 %v178
    %v230 = vunpack.c.h.b16 %v178
    %v231 = vunpack.c.l.b16 %v179
    %v232 = vunpack.c.h.b16 %v179
    %v233 = vunpack.c.l.b16 %v180
    %v234 = vunpack.c.h.b16 %v180
    %v235 = vunpack.c.l.b16 %v181
    %v236 = vunpack.c.h.b16 %v181
    %v237 = vunpack.c.l.b16 %v182
    %v238 = vunpack.c.h.b16 %v182
    %v239 = vunpack.c.l.b16 %v183
    %v240 = vunpack.c.h.b16 %v183
    %v241 = vunpack.c.l.b16 %v184
    %v242 = vunpack.c.h.b16 %v184
    %v243 = vunpack.c.l.b16 %v185
    %v244 = vunpack.c.h.b16 %v185
    %v245 = vunpack.c.l.b16 %v186
    %v246 = vunpack.c.h.b16 %v186
    %v247 = vunpack.c.l.b16 %v187
    %v248 = vunpack.c.h.b16 %v187
    %v249 = vpack.c.b16 %v219, %v217
    %v250 = vpack.c.b16 %v220, %v218
    %v251 = vpack.c.b16 %v223, %v221
    %v252 = vpack.c.b16 %v224, %v222
    %v253 = vpack.c.b16 %v227, %v225
    %v254 = vpack.c.b16 %v228, %v226
    %v255 = vpack.c.b16 %v231, %v229
    %v256 = vpack.c.b16 %v232, %v230
    %v257 = vpack.c.b16 %v235, %v233
    %v258 = vpack.c.b16 %v236, %v234
    %v259 = vpack.c.b16 %v239, %v237
    %v260 = vpack.c.b16 %v240, %v238
    %v261 = vpack.c.b16 %v243, %v241
    %v262 = vpack.c.b16 %v244, %v242
    %v263 = vpack.c.b16 %v247, %v245
    %v264 = vpack.c.b16 %v248, %v246
    %281 = vmatprep.subr.bf16.mxu0 %v250
    %282 = vmatpush1.bf16.msra.mxu0 %v249
    %283 = vmatprep.subr.bf16.mxu0 %v252
    %284 = vmatpush1.bf16.msra.mxu0 %v251
    %285 = vmatprep.subr.bf16.mxu0 %v254
    %286 = vmatpush1.bf16.msra.mxu0 %v253
    %287 = vmatprep.subr.bf16.mxu0 %v256
    %288 = vmatpush1.bf16.msra.mxu0 %v255
    %289 = vmatprep.subr.bf16.mxu0 %v258
    %290 = vmatpush1.bf16.msra.mxu0 %v257
    %291 = vmatprep.subr.bf16.mxu0 %v260
    %292 = vmatpush1.bf16.msra.mxu0 %v259
    %293 = vmatprep.subr.bf16.mxu0 %v262
    %294 = vmatpush1.bf16.msra.mxu0 %v261
    %295 = vmatprep.subr.bf16.mxu0 %v264
    %296 = vmatpush1.bf16.msra.mxu0 %v263
    %297 = vmatprep.subr.bf16.mxu0 0
    %298 = vmatpush1.bf16.msra.mxu0 0
    %299 = vmatprep.subr.bf16.mxu0 0
    %300 = vmatpush1.bf16.msra.mxu0 0
    %301 = vmatprep.subr.bf16.mxu0 0
    %302 = vmatpush1.bf16.msra.mxu0 0
    %303 = vmatprep.subr.bf16.mxu0 0
    %304 = vmatpush1.bf16.msra.mxu0 0
    %305 = vmatprep.subr.bf16.mxu0 0
    %306 = vmatpush1.bf16.msra.mxu0 0
    %307 = vmatprep.subr.bf16.mxu0 0
    %308 = vmatpush1.bf16.msra.mxu0 0
    %309 = vmatprep.subr.bf16.mxu0 0
    %310 = vmatpush1.bf16.msra.mxu0 0
    %311 = vmatprep.subr.bf16.mxu0 0
    %312 = vmatpush1.bf16.msra.mxu0 0
    %313 = vmatprep.mubr.bf16.mxu0 0
    %314 = vmatmul.mubr.bf16.gmra.mrb[0].mxu0 %v171
    %v315 = vpop.f32.mrb[0].mxu0
    %v316 = vadd.f32 %v194, %v315
    %v317 = vpop.f32.mrb[0].mxu0
    %v318 = vadd.f32 %v198, %v317
    %v319 = vpop.f32.mrb[0].mxu0
    %v320 = vpop.f32.mrb[0].mxu0
    %321 = vdwg.mxu0
    %v322 = vmax.f32 %v316, 0.0
    %v323 = vmax.f32 %v318, 0.0
    %v324 = vpack.c.bf16 %v322, %v322
    %v325 = vpack.c.bf16 %v323, %v323
    %v326 = vld [vmem:[#allocation7] sm:$0xff]
    %v327 = vld [vmem:[#allocation7 + $0x8] sm:$0xff]
    %v328 = vld [vmem:[#allocation7 + $0x10] sm:$0xff]
    %v329 = vld [vmem:[#allocation7 + $0x18] sm:$0xff]
    %v330 = vld [vmem:[#allocation7 + $0x20] sm:$0xff]
    %v331 = vld [vmem:[#allocation7 + $0x28] sm:$0xff]
    %v332 = vld [vmem:[#allocation7 + $0x30] sm:$0xff]
    %v333 = vld [vmem:[#allocation7 + $0x38] sm:$0xff]
    %v334 = vld [vmem:[#allocation7 + $0x40] sm:$0xff]
    %v335 = vld [vmem:[#allocation7 + $0x48] sm:$0xff]
    %v336 = vld [vmem:[#allocation7 + $0x50] sm:$0xff]
    %v337 = vld [vmem:[#allocation7 + $0x58] sm:$0xff]
    %v338 = vld [vmem:[#allocation7 + $0x60] sm:$0xff]
    %v339 = vld [vmem:[#allocation7 + $0x68] sm:$0xff]
    %v340 = vld [vmem:[#allocation7 + $0x70] sm:$0xff]
    %v341 = vld [vmem:[#allocation7 + $0x78] sm:$0xff]
    %v342 = vld [vmem:[#allocation7 + $0x80] sm:$0xff]
    %v343 = vld [vmem:[#allocation7 + $0x88] sm:$0xff]
    %v344 = vld [vmem:[#allocation7 + $0x90] sm:$0xff]
    %v345 = vld [vmem:[#allocation7 + $0x98] sm:$0xff]
    %v346 = vld [vmem:[#allocation7 + $0xa0] sm:$0xff]
    %v347 = vld [vmem:[#allocation7 + $0xa8] sm:$0xff]
    %v348 = vld [vmem:[#allocation7 + $0xb0] sm:$0xff]
    %v349 = vld [vmem:[#allocation7 + $0xb8] sm:$0xff]
    %v350 = vld [vmem:[#allocation7 + $0xc0] sm:$0xff]
    %v351 = vld [vmem:[#allocation7 + $0xc8] sm:$0xff]
    %v352 = vld [vmem:[#allocation7 + $0xd0] sm:$0xff]
    %v353 = vld [vmem:[#allocation7 + $0xd8] sm:$0xff]
    %v354 = vld [vmem:[#allocation7 + $0xe0] sm:$0xff]
    %v355 = vld [vmem:[#allocation7 + $0xe8] sm:$0xff]
    %v356 = vld [vmem:[#allocation7 + $0xf0] sm:$0xff]
    %v357 = vld [vmem:[#allocation7 + $0xf8] sm:$0xff]
    %v358 = vld [vmem:[#allocation7 + $0x100] sm:$0xff]
    %v359 = vld [vmem:[#allocation7 + $0x108] sm:$0xff]
    %v360 = vld [vmem:[#allocation7 + $0x110] sm:$0xff]
    %v361 = vld [vmem:[#allocation7 + $0x118] sm:$0xff]
    %v362 = vld [vmem:[#allocation7 + $0x120] sm:$0xff]
    %v363 = vld [vmem:[#allocation7 + $0x128] sm:$0xff]
    %v364 = vld [vmem:[#allocation7 + $0x130] sm:$0xff]
    %v365 = vld [vmem:[#allocation7 + $0x138] sm:$0xff]
    %v366 = vld [vmem:[#allocation7 + $0x140] sm:$0xff]
    %v367 = vld [vmem:[#allocation7 + $0x148] sm:$0xff]
    %v368 = vld [vmem:[#allocation7 + $0x150] sm:$0xff]
    %v369 = vld [vmem:[#allocation7 + $0x158] sm:$0xff]
    %v370 = vld [vmem:[#allocation7 + $0x160] sm:$0xff]
    %v371 = vld [vmem:[#allocation7 + $0x168] sm:$0xff]
    %v372 = vld [vmem:[#allocation7 + $0x170] sm:$0xff]
    %v373 = vld [vmem:[#allocation7 + $0x178] sm:$0xff]
    %v374 = vld [vmem:[#allocation7 + $0x180] sm:$0xff]
    %v375 = vld [vmem:[#allocation7 + $0x188] sm:$0xff]
    %v376 = vld [vmem:[#allocation7 + $0x190] sm:$0xff]
    %v377 = vld [vmem:[#allocation7 + $0x198] sm:$0xff]
    %v378 = vld [vmem:[#allocation7 + $0x1a0] sm:$0xff]
    %v379 = vld [vmem:[#allocation7 + $0x1a8] sm:$0xff]
    %v380 = vld [vmem:[#allocation7 + $0x1b0] sm:$0xff]
    %v381 = vld [vmem:[#allocation7 + $0x1b8] sm:$0xff]
    %v382 = vld [vmem:[#allocation7 + $0x1c0] sm:$0xff]
    %v383 = vld [vmem:[#allocation7 + $0x1c8] sm:$0xff]
    %v384 = vld [vmem:[#allocation7 + $0x1d0] sm:$0xff]
    %v385 = vld [vmem:[#allocation7 + $0x1d8] sm:$0xff]
    %v386 = vld [vmem:[#allocation7 + $0x1e0] sm:$0xff]
    %v387 = vld [vmem:[#allocation7 + $0x1e8] sm:$0xff]
    %v388 = vld [vmem:[#allocation7 + $0x1f0] sm:$0xff]
    %v389 = vld [vmem:[#allocation7 + $0x1f8] sm:$0xff]
    %s390 = scalar_lea.vmem %s4, 2
    %v391 = vld [vmem:[%s390] ss:$8 sm:$0xf]
    %v393 = vlaneseq
    %v394 = vshrl.u32 %v393, 7
    %v395 = vsub.s32 0, %v394
    %v396 = vrot.slane %v391, %v395
    %v397 = vlaneseq
    %v398 = vshrl.u32 %v397, 7
    %v399 = vsub.s32 1, %v398
    %v400 = vrot.slane %v391, %v399
    %v401 = vlaneseq
    %v402 = vshrl.u32 %v401, 7
    %v403 = vsub.s32 2, %v402
    %v404 = vrot.slane %v391, %v403
    %v405 = vlaneseq
    %v406 = vshrl.u32 %v405, 7
    %v407 = vsub.s32 3, %v406
    %v408 = vrot.slane %v391, %v407
    %v477 = vunpack.c.l.b16 %v326
    %v478 = vunpack.c.h.b16 %v326
    %v479 = vunpack.c.l.b16 %v327
    %v480 = vunpack.c.h.b16 %v327
    %v481 = vunpack.c.l.b16 %v328
    %v482 = vunpack.c.h.b16 %v328
    %v483 = vunpack.c.l.b16 %v329
    %v484 = vunpack.c.h.b16 %v329
    %v485 = vunpack.c.l.b16 %v330
    %v486 = vunpack.c.h.b16 %v330
    %v487 = vunpack.c.l.b16 %v331
    %v488 = vunpack.c.h.b16 %v331
    %v489 = vunpack.c.l.b16 %v332
    %v490 = vunpack.c.h.b16 %v332
    %v491 = vunpack.c.l.b16 %v333
    %v492 = vunpack.c.h.b16 %v333
    %v493 = vunpack.c.l.b16 %v334
    %v494 = vunpack.c.h.b16 %v334
    %v495 = vunpack.c.l.b16 %v335
    %v496 = vunpack.c.h.b16 %v335
    %v497 = vunpack.c.l.b16 %v336
    %v498 = vunpack.c.h.b16 %v336
    %v499 = vunpack.c.l.b16 %v337
    %v500 = vunpack.c.h.b16 %v337
    %v501 = vunpack.c.l.b16 %v338
    %v502 = vunpack.c.h.b16 %v338
    %v503 = vunpack.c.l.b16 %v339
    %v504 = vunpack.c.h.b16 %v339
    %v505 = vunpack.c.l.b16 %v340
    %v506 = vunpack.c.h.b16 %v340
    %v507 = vunpack.c.l.b16 %v341
    %v508 = vunpack.c.h.b16 %v341
    %v509 = vunpack.c.l.b16 %v342
    %v510 = vunpack.c.h.b16 %v342
    %v511 = vunpack.c.l.b16 %v343
    %v512 = vunpack.c.h.b16 %v343
    %v513 = vunpack.c.l.b16 %v344
    %v514 = vunpack.c.h.b16 %v344
    %v515 = vunpack.c.l.b16 %v345
    %v516 = vunpack.c.h.b16 %v345
    %v517 = vunpack.c.l.b16 %v346
    %v518 = vunpack.c.h.b16 %v346
    %v519 = vunpack.c.l.b16 %v347
    %v520 = vunpack.c.h.b16 %v347
    %v521 = vunpack.c.l.b16 %v348
    %v522 = vunpack.c.h.b16 %v348
    %v523 = vunpack.c.l.b16 %v349
    %v524 = vunpack.c.h.b16 %v349
    %v525 = vunpack.c.l.b16 %v350
    %v526 = vunpack.c.h.b16 %v350
    %v527 = vunpack.c.l.b16 %v351
    %v528 = vunpack.c.h.b16 %v351
    %v529 = vunpack.c.l.b16 %v352
    %v530 = vunpack.c.h.b16 %v352
    %v531 = vunpack.c.l.b16 %v353
    %v532 = vunpack.c.h.b16 %v353
    %v533 = vunpack.c.l.b16 %v354
    %v534 = vunpack.c.h.b16 %v354
    %v535 = vunpack.c.l.b16 %v355
    %v536 = vunpack.c.h.b16 %v355
    %v537 = vunpack.c.l.b16 %v356
    %v538 = vunpack.c.h.b16 %v356
    %v539 = vunpack.c.l.b16 %v357
    %v540 = vunpack.c.h.b16 %v357
    %v541 = vunpack.c.l.b16 %v358
    %v542 = vunpack.c.h.b16 %v358
    %v543 = vunpack.c.l.b16 %v359
    %v544 = vunpack.c.h.b16 %v359
    %v545 = vunpack.c.l.b16 %v360
    %v546 = vunpack.c.h.b16 %v360
    %v547 = vunpack.c.l.b16 %v361
    %v548 = vunpack.c.h.b16 %v361
    %v549 = vunpack.c.l.b16 %v362
    %v550 = vunpack.c.h.b16 %v362
    %v551 = vunpack.c.l.b16 %v363
    %v552 = vunpack.c.h.b16 %v363
    %v553 = vunpack.c.l.b16 %v364
    %v554 = vunpack.c.h.b16 %v364
    %v555 = vunpack.c.l.b16 %v365
    %v556 = vunpack.c.h.b16 %v365
    %v557 = vunpack.c.l.b16 %v366
    %v558 = vunpack.c.h.b16 %v366
    %v559 = vunpack.c.l.b16 %v367
    %v560 = vunpack.c.h.b16 %v367
    %v561 = vunpack.c.l.b16 %v368
    %v562 = vunpack.c.h.b16 %v368
    %v563 = vunpack.c.l.b16 %v369
    %v564 = vunpack.c.h.b16 %v369
    %v565 = vunpack.c.l.b16 %v370
    %v566 = vunpack.c.h.b16 %v370
    %v567 = vunpack.c.l.b16 %v371
    %v568 = vunpack.c.h.b16 %v371
    %v569 = vunpack.c.l.b16 %v372
    %v570 = vunpack.c.h.b16 %v372
    %v571 = vunpack.c.l.b16 %v373
    %v572 = vunpack.c.h.b16 %v373
    %v573 = vunpack.c.l.b16 %v374
    %v574 = vunpack.c.h.b16 %v374
    %v575 = vunpack.c.l.b16 %v375
    %v576 = vunpack.c.h.b16 %v375
    %v577 = vunpack.c.l.b16 %v376
    %v578 = vunpack.c.h.b16 %v376
    %v579 = vunpack.c.l.b16 %v377
    %v580 = vunpack.c.h.b16 %v377
    %v581 = vunpack.c.l.b16 %v378
    %v582 = vunpack.c.h.b16 %v378
    %v583 = vunpack.c.l.b16 %v379
    %v584 = vunpack.c.h.b16 %v379
    %v585 = vunpack.c.l.b16 %v380
    %v586 = vunpack.c.h.b16 %v380
    %v587 = vunpack.c.l.b16 %v381
    %v588 = vunpack.c.h.b16 %v381
    %v589 = vunpack.c.l.b16 %v382
    %v590 = vunpack.c.h.b16 %v382
    %v591 = vunpack.c.l.b16 %v383
    %v592 = vunpack.c.h.b16 %v383
    %v593 = vunpack.c.l.b16 %v384
    %v594 = vunpack.c.h.b16 %v384
    %v595 = vunpack.c.l.b16 %v385
    %v596 = vunpack.c.h.b16 %v385
    %v597 = vunpack.c.l.b16 %v386
    %v598 = vunpack.c.h.b16 %v386
    %v599 = vunpack.c.l.b16 %v387
    %v600 = vunpack.c.h.b16 %v387
    %v601 = vunpack.c.l.b16 %v388
    %v602 = vunpack.c.h.b16 %v388
    %v603 = vunpack.c.l.b16 %v389
    %v604 = vunpack.c.h.b16 %v389
    %v605 = vpack.c.b16 %v481, %v477
    %v606 = vpack.c.b16 %v482, %v478
    %v607 = vpack.c.b16 %v483, %v479
    %v608 = vpack.c.b16 %v484, %v480
    %v609 = vpack.c.b16 %v489, %v485
    %v610 = vpack.c.b16 %v490, %v486
    %v611 = vpack.c.b16 %v491, %v487
    %v612 = vpack.c.b16 %v492, %v488
    %v613 = vpack.c.b16 %v497, %v493
    %v614 = vpack.c.b16 %v498, %v494
    %v615 = vpack.c.b16 %v499, %v495
    %v616 = vpack.c.b16 %v500, %v496
    %v617 = vpack.c.b16 %v505, %v501
    %v618 = vpack.c.b16 %v506, %v502
    %v619 = vpack.c.b16 %v507, %v503
    %v620 = vpack.c.b16 %v508, %v504
    %v621 = vpack.c.b16 %v513, %v509
    %v622 = vpack.c.b16 %v514, %v510
    %v623 = vpack.c.b16 %v515, %v511
    %v624 = vpack.c.b16 %v516, %v512
    %v625 = vpack.c.b16 %v521, %v517
    %v626 = vpack.c.b16 %v522, %v518
    %v627 = vpack.c.b16 %v523, %v519
    %v628 = vpack.c.b16 %v524, %v520
    %v629 = vpack.c.b16 %v529, %v525
    %v630 = vpack.c.b16 %v530, %v526
    %v631 = vpack.c.b16 %v531, %v527
    %v632 = vpack.c.b16 %v532, %v528
    %v633 = vpack.c.b16 %v537, %v533
    %v634 = vpack.c.b16 %v538, %v534
    %v635 = vpack.c.b16 %v539, %v535
    %v636 = vpack.c.b16 %v540, %v536
    %v637 = vpack.c.b16 %v545, %v541
    %v638 = vpack.c.b16 %v546, %v542
    %v639 = vpack.c.b16 %v547, %v543
    %v640 = vpack.c.b16 %v548, %v544
    %v641 = vpack.c.b16 %v553, %v549
    %v642 = vpack.c.b16 %v554, %v550
    %v643 = vpack.c.b16 %v555, %v551
    %v644 = vpack.c.b16 %v556, %v552
    %v645 = vpack.c.b16 %v561, %v557
    %v646 = vpack.c.b16 %v562, %v558
    %v647 = vpack.c.b16 %v563, %v559
    %v648 = vpack.c.b16 %v564, %v560
    %v649 = vpack.c.b16 %v569, %v565
    %v650 = vpack.c.b16 %v570, %v566
    %v651 = vpack.c.b16 %v571, %v567
    %v652 = vpack.c.b16 %v572, %v568
    %v653 = vpack.c.b16 %v577, %v573
    %v654 = vpack.c.b16 %v578, %v574
    %v655 = vpack.c.b16 %v579, %v575
    %v656 = vpack.c.b16 %v580, %v576
    %v657 = vpack.c.b16 %v585, %v581
    %v658 = vpack.c.b16 %v586, %v582
    %v659 = vpack.c.b16 %v587, %v583
    %v660 = vpack.c.b16 %v588, %v584
    %v661 = vpack.c.b16 %v593, %v589
    %v662 = vpack.c.b16 %v594, %v590
    %v663 = vpack.c.b16 %v595, %v591
    %v664 = vpack.c.b16 %v596, %v592
    %v665 = vpack.c.b16 %v601, %v597
    %v666 = vpack.c.b16 %v602, %v598
    %v667 = vpack.c.b16 %v603, %v599
    %v668 = vpack.c.b16 %v604, %v600
    %733 = vmatprep.subr.bf16.mxu0 %v606
    %734 = vmatpush1.bf16.msra.mxu0 %v605
    %735 = vmatprep.subr.bf16.mxu0 %v610
    %736 = vmatpush1.bf16.msra.mxu0 %v609
    %737 = vmatprep.subr.bf16.mxu0 %v614
    %738 = vmatpush1.bf16.msra.mxu0 %v613
    %739 = vmatprep.subr.bf16.mxu0 %v618
    %740 = vmatpush1.bf16.msra.mxu0 %v617
    %741 = vmatprep.subr.bf16.mxu0 %v622
    %742 = vmatpush1.bf16.msra.mxu0 %v621
    %743 = vmatprep.subr.bf16.mxu0 %v626
    %744 = vmatpush1.bf16.msra.mxu0 %v625
    %745 = vmatprep.subr.bf16.mxu0 %v630
    %746 = vmatpush1.bf16.msra.mxu0 %v629
    %747 = vmatprep.subr.bf16.mxu0 %v634
    %748 = vmatpush1.bf16.msra.mxu0 %v633
    %749 = vmatprep.subr.bf16.mxu0 %v638
    %750 = vmatpush1.bf16.msra.mxu0 %v637
    %751 = vmatprep.subr.bf16.mxu0 %v642
    %752 = vmatpush1.bf16.msra.mxu0 %v641
    %753 = vmatprep.subr.bf16.mxu0 %v646
    %754 = vmatpush1.bf16.msra.mxu0 %v645
    %755 = vmatprep.subr.bf16.mxu0 %v650
    %756 = vmatpush1.bf16.msra.mxu0 %v649
    %757 = vmatprep.subr.bf16.mxu0 %v654
    %758 = vmatpush1.bf16.msra.mxu0 %v653
    %759 = vmatprep.subr.bf16.mxu0 %v658
    %760 = vmatpush1.bf16.msra.mxu0 %v657
    %761 = vmatprep.subr.bf16.mxu0 %v662
    %762 = vmatpush1.bf16.msra.mxu0 %v661
    %763 = vmatprep.subr.bf16.mxu0 %v666
    %764 = vmatpush1.bf16.msra.mxu0 %v665
    %765 = vmatprep.mubr.bf16.mxu0 %v325
    %766 = vmatmul.mubr.bf16.gmra.mrb[0].mxu0 %v324
    %v767 = vpop.f32.mrb[0].mxu0
    %v768 = vadd.f32 %v396, %v767
    %v769 = vpop.f32.mrb[0].mxu0
    %v770 = vadd.f32 %v400, %v769
    %v771 = vpop.f32.mrb[0].mxu0
    %v772 = vpop.f32.mrb[0].mxu0
    %773 = vdwg.mxu0
    %774 = vmatprep.subr.bf16.mxu0 %v608
    %775 = vmatpush1.bf16.msra.mxu0 %v607
    %776 = vmatprep.subr.bf16.mxu0 %v612
    %777 = vmatpush1.bf16.msra.mxu0 %v611
    %778 = vmatprep.subr.bf16.mxu0 %v616
    %779 = vmatpush1.bf16.msra.mxu0 %v615
    %780 = vmatprep.subr.bf16.mxu0 %v620
    %781 = vmatpush1.bf16.msra.mxu0 %v619
    %782 = vmatprep.subr.bf16.mxu0 %v624
    %783 = vmatpush1.bf16.msra.mxu0 %v623
    %784 = vmatprep.subr.bf16.mxu0 %v628
    %785 = vmatpush1.bf16.msra.mxu0 %v627
    %786 = vmatprep.subr.bf16.mxu0 %v632
    %787 = vmatpush1.bf16.msra.mxu0 %v631
    %788 = vmatprep.subr.bf16.mxu0 %v636
    %789 = vmatpush1.bf16.msra.mxu0 %v635
    %790 = vmatprep.subr.bf16.mxu0 %v640
    %791 = vmatpush1.bf16.msra.mxu0 %v639
    %792 = vmatprep.subr.bf16.mxu0 %v644
    %793 = vmatpush1.bf16.msra.mxu0 %v643
    %794 = vmatprep.subr.bf16.mxu0 %v648
    %795 = vmatpush1.bf16.msra.mxu0 %v647
    %796 = vmatprep.subr.bf16.mxu0 %v652
    %797 = vmatpush1.bf16.msra.mxu0 %v651
    %798 = vmatprep.subr.bf16.mxu0 %v656
    %799 = vmatpush1.bf16.msra.mxu0 %v655
    %800 = vmatprep.subr.bf16.mxu0 %v660
    %801 = vmatpush1.bf16.msra.mxu0 %v659
    %802 = vmatprep.subr.bf16.mxu0 %v664
    %803 = vmatpush1.bf16.msra.mxu0 %v663
    %804 = vmatprep.subr.bf16.mxu0 %v668
    %805 = vmatpush1.bf16.msra.mxu0 %v667
    %806 = vmatprep.mubr.bf16.mxu0 %v325
    %807 = vmatmul.mubr.bf16.gmra.mrb[0].mxu0 %v324
    %v808 = vpop.f32.mrb[0].mxu0
    %v809 = vadd.f32 %v404, %v808
    %v810 = vpop.f32.mrb[0].mxu0
    %v811 = vadd.f32 %v408, %v810
    %v812 = vpop.f32.mrb[0].mxu0
    %v813 = vpop.f32.mrb[0].mxu0
    %814 = vdwg.mxu0
    %v815 = vmax.f32 %v768, 0.0
    %v816 = vmax.f32 %v770, 0.0
    %v817 = vmax.f32 %v809, 0.0
    %v818 = vmax.f32 %v811, 0.0
    %v819 = vpack.c.bf16 %v815, %v815
    %v820 = vpack.c.bf16 %v816, %v816
    %v821 = vpack.c.bf16 %v817, %v817
    %v822 = vpack.c.bf16 %v818, %v818
    %v823 = vld [vmem:[#allocation5 + $0x80] sm:$0xff]
    %v824 = vld [vmem:[#allocation5 + $0x88] sm:$0xff]
    %v825 = vld [vmem:[#allocation5 + $0x90] sm:$0xff]
    %v826 = vld [vmem:[#allocation5 + $0x98] sm:$0xff]
    %v827 = vld [vmem:[#allocation5 + $0xa0] sm:$0xff]
    %v828 = vld [vmem:[#allocation5 + $0xa8] sm:$0xff]
    %v829 = vld [vmem:[#allocation5 + $0xb0] sm:$0xff]
    %v830 = vld [vmem:[#allocation5 + $0xb8] sm:$0xff]
    %v831 = vld [vmem:[#allocation5 + $0xc0] sm:$0xff]
    %v832 = vld [vmem:[#allocation5 + $0xc8] sm:$0xff]
    %v833 = vld [vmem:[#allocation5 + $0xd0] sm:$0xff]
    %v834 = vld [vmem:[#allocation5 + $0xd8] sm:$0xff]
    %v835 = vld [vmem:[#allocation5 + $0xe0] sm:$0xff]
    %v836 = vld [vmem:[#allocation5 + $0xe8] sm:$0xff]
    %v837 = vld [vmem:[#allocation5 + $0xf0] sm:$0xff]
    %v838 = vld [vmem:[#allocation5 + $0xf8] sm:$0xff]
    %v839 = vld [vmem:[#allocation5 + $0x100] sm:$0xff]
    %v840 = vld [vmem:[#allocation5 + $0x108] sm:$0xff]
    %v841 = vld [vmem:[#allocation5 + $0x110] sm:$0xff]
    %v842 = vld [vmem:[#allocation5 + $0x118] sm:$0xff]
    %v843 = vld [vmem:[#allocation5 + $0x120] sm:$0xff]
    %v844 = vld [vmem:[#allocation5 + $0x128] sm:$0xff]
    %v845 = vld [vmem:[#allocation5 + $0x130] sm:$0xff]
    %v846 = vld [vmem:[#allocation5 + $0x138] sm:$0xff]
    %v847 = vld [vmem:[#allocation5 + $0x140] sm:$0xff]
    %v848 = vld [vmem:[#allocation5 + $0x148] sm:$0xff]
    %v849 = vld [vmem:[#allocation5 + $0x150] sm:$0xff]
    %v850 = vld [vmem:[#allocation5 + $0x158] sm:$0xff]
    %v851 = vld [vmem:[#allocation5 + $0x160] sm:$0xff]
    %v852 = vld [vmem:[#allocation5 + $0x168] sm:$0xff]
    %v853 = vld [vmem:[#allocation5 + $0x170] sm:$0xff]
    %v854 = vld [vmem:[#allocation5 + $0x178] sm:$0xff]
    %v855 = vld [vmem:[#allocation5 + $0x180] sm:$0xff]
    %v856 = vld [vmem:[#allocation5 + $0x188] sm:$0xff]
    %v857 = vld [vmem:[#allocation5 + $0x190] sm:$0xff]
    %v858 = vld [vmem:[#allocation5 + $0x198] sm:$0xff]
    %v859 = vld [vmem:[#allocation5 + $0x1a0] sm:$0xff]
    %v860 = vld [vmem:[#allocation5 + $0x1a8] sm:$0xff]
    %v861 = vld [vmem:[#allocation5 + $0x1b0] sm:$0xff]
    %v862 = vld [vmem:[#allocation5 + $0x1b8] sm:$0xff]
    %v863 = vld [vmem:[#allocation5 + $0x1c0] sm:$0xff]
    %v864 = vld [vmem:[#allocation5 + $0x1c8] sm:$0xff]
    %v865 = vld [vmem:[#allocation5 + $0x1d0] sm:$0xff]
    %v866 = vld [vmem:[#allocation5 + $0x1d8] sm:$0xff]
    %v867 = vld [vmem:[#allocation5 + $0x1e0] sm:$0xff]
    %v868 = vld [vmem:[#allocation5 + $0x1e8] sm:$0xff]
    %v869 = vld [vmem:[#allocation5 + $0x1f0] sm:$0xff]
    %v870 = vld [vmem:[#allocation5 + $0x1f8] sm:$0xff]
    %v871 = vld [vmem:[#allocation5 + $0x200] sm:$0xff]
    %v872 = vld [vmem:[#allocation5 + $0x208] sm:$0xff]
    %v873 = vld [vmem:[#allocation5 + $0x210] sm:$0xff]
    %v874 = vld [vmem:[#allocation5 + $0x218] sm:$0xff]
    %v875 = vld [vmem:[#allocation5 + $0x220] sm:$0xff]
    %v876 = vld [vmem:[#allocation5 + $0x228] sm:$0xff]
    %v877 = vld [vmem:[#allocation5 + $0x230] sm:$0xff]
    %v878 = vld [vmem:[#allocation5 + $0x238] sm:$0xff]
    %v879 = vld [vmem:[#allocation5 + $0x240] sm:$0xff]
    %v880 = vld [vmem:[#allocation5 + $0x248] sm:$0xff]
    %v881 = vld [vmem:[#allocation5 + $0x250] sm:$0xff]
    %v882 = vld [vmem:[#allocation5 + $0x258] sm:$0xff]
    %v883 = vld [vmem:[#allocation5 + $0x260] sm:$0xff]
    %v884 = vld [vmem:[#allocation5 + $0x268] sm:$0xff]
    %v885 = vld [vmem:[#allocation5 + $0x270] sm:$0xff]
    %v886 = vld [vmem:[#allocation5 + $0x278] sm:$0xff]
    %s887 = scalar_lea.vmem %s4, 3
    %v888 = vld [vmem:[%s887] ss:$8 sm:$0x3]
    %v890 = vlaneseq
    %v891 = vshrl.u32 %v890, 7
    %v892 = vsub.s32 0, %v891
    %v893 = vrot.slane %v888, %v892
    %v894 = vlaneseq
    %v895 = vshrl.u32 %v894, 7
    %v896 = vsub.s32 1, %v895
    %v897 = vrot.slane %v888, %v896
    %v964 = vunpack.c.l.b16 %v823
    %v965 = vunpack.c.h.b16 %v823
    %v966 = vunpack.c.l.b16 %v824
    %v967 = vunpack.c.h.b16 %v824
    %v968 = vunpack.c.l.b16 %v825
    %v969 = vunpack.c.h.b16 %v825
    %v970 = vunpack.c.l.b16 %v826
    %v971 = vunpack.c.h.b16 %v826
    %v972 = vunpack.c.l.b16 %v827
    %v973 = vunpack.c.h.b16 %v827
    %v974 = vunpack.c.l.b16 %v828
    %v975 = vunpack.c.h.b16 %v828
    %v976 = vunpack.c.l.b16 %v829
    %v977 = vunpack.c.h.b16 %v829
    %v978 = vunpack.c.l.b16 %v830
    %v979 = vunpack.c.h.b16 %v830
    %v980 = vunpack.c.l.b16 %v831
    %v981 = vunpack.c.h.b16 %v831
    %v982 = vunpack.c.l.b16 %v832
    %v983 = vunpack.c.h.b16 %v832
    %v984 = vunpack.c.l.b16 %v833
    %v985 = vunpack.c.h.b16 %v833
    %v986 = vunpack.c.l.b16 %v834
    %v987 = vunpack.c.h.b16 %v834
    %v988 = vunpack.c.l.b16 %v835
    %v989 = vunpack.c.h.b16 %v835
    %v990 = vunpack.c.l.b16 %v836
    %v991 = vunpack.c.h.b16 %v836
    %v992 = vunpack.c.l.b16 %v837
    %v993 = vunpack.c.h.b16 %v837
    %v994 = vunpack.c.l.b16 %v838
    %v995 = vunpack.c.h.b16 %v838
    %v996 = vunpack.c.l.b16 %v839
    %v997 = vunpack.c.h.b16 %v839
    %v998 = vunpack.c.l.b16 %v840
    %v999 = vunpack.c.h.b16 %v840
    %v1000 = vunpack.c.l.b16 %v841
    %v1001 = vunpack.c.h.b16 %v841
    %v1002 = vunpack.c.l.b16 %v842
    %v1003 = vunpack.c.h.b16 %v842
    %v1004 = vunpack.c.l.b16 %v843
    %v1005 = vunpack.c.h.b16 %v843
    %v1006 = vunpack.c.l.b16 %v844
    %v1007 = vunpack.c.h.b16 %v844
    %v1008 = vunpack.c.l.b16 %v845
    %v1009 = vunpack.c.h.b16 %v845
    %v1010 = vunpack.c.l.b16 %v846
    %v1011 = vunpack.c.h.b16 %v846
    %v1012 = vunpack.c.l.b16 %v847
    %v1013 = vunpack.c.h.b16 %v847
    %v1014 = vunpack.c.l.b16 %v848
    %v1015 = vunpack.c.h.b16 %v848
    %v1016 = vunpack.c.l.b16 %v849
    %v1017 = vunpack.c.h.b16 %v849
    %v1018 = vunpack.c.l.b16 %v850
    %v1019 = vunpack.c.h.b16 %v850
    %v1020 = vunpack.c.l.b16 %v851
    %v1021 = vunpack.c.h.b16 %v851
    %v1022 = vunpack.c.l.b16 %v852
    %v1023 = vunpack.c.h.b16 %v852
    %v1024 = vunpack.c.l.b16 %v853
    %v1025 = vunpack.c.h.b16 %v853
    %v1026 = vunpack.c.l.b16 %v854
    %v1027 = vunpack.c.h.b16 %v854
    %v1028 = vunpack.c.l.b16 %v855
    %v1029 = vunpack.c.h.b16 %v855
    %v1030 = vunpack.c.l.b16 %v856
    %v1031 = vunpack.c.h.b16 %v856
    %v1032 = vunpack.c.l.b16 %v857
    %v1033 = vunpack.c.h.b16 %v857
    %v1034 = vunpack.c.l.b16 %v858
    %v1035 = vunpack.c.h.b16 %v858
    %v1036 = vunpack.c.l.b16 %v859
    %v1037 = vunpack.c.h.b16 %v859
    %v1038 = vunpack.c.l.b16 %v860
    %v1039 = vunpack.c.h.b16 %v860
    %v1040 = vunpack.c.l.b16 %v861
    %v1041 = vunpack.c.h.b16 %v861
    %v1042 = vunpack.c.l.b16 %v862
    %v1043 = vunpack.c.h.b16 %v862
    %v1044 = vunpack.c.l.b16 %v863
    %v1045 = vunpack.c.h.b16 %v863
    %v1046 = vunpack.c.l.b16 %v864
    %v1047 = vunpack.c.h.b16 %v864
    %v1048 = vunpack.c.l.b16 %v865
    %v1049 = vunpack.c.h.b16 %v865
    %v1050 = vunpack.c.l.b16 %v866
    %v1051 = vunpack.c.h.b16 %v866
    %v1052 = vunpack.c.l.b16 %v867
    %v1053 = vunpack.c.h.b16 %v867
    %v1054 = vunpack.c.l.b16 %v868
    %v1055 = vunpack.c.h.b16 %v868
    %v1056 = vunpack.c.l.b16 %v869
    %v1057 = vunpack.c.h.b16 %v869
    %v1058 = vunpack.c.l.b16 %v870
    %v1059 = vunpack.c.h.b16 %v870
    %v1060 = vunpack.c.l.b16 %v871
    %v1061 = vunpack.c.h.b16 %v871
    %v1062 = vunpack.c.l.b16 %v872
    %v1063 = vunpack.c.h.b16 %v872
    %v1064 = vunpack.c.l.b16 %v873
    %v1065 = vunpack.c.h.b16 %v873
    %v1066 = vunpack.c.l.b16 %v874
    %v1067 = vunpack.c.h.b16 %v874
    %v1068 = vunpack.c.l.b16 %v875
    %v1069 = vunpack.c.h.b16 %v875
    %v1070 = vunpack.c.l.b16 %v876
    %v1071 = vunpack.c.h.b16 %v876
    %v1072 = vunpack.c.l.b16 %v877
    %v1073 = vunpack.c.h.b16 %v877
    %v1074 = vunpack.c.l.b16 %v878
    %v1075 = vunpack.c.h.b16 %v878
    %v1076 = vunpack.c.l.b16 %v879
    %v1077 = vunpack.c.h.b16 %v879
    %v1078 = vunpack.c.l.b16 %v880
    %v1079 = vunpack.c.h.b16 %v880
    %v1080 = vunpack.c.l.b16 %v881
    %v1081 = vunpack.c.h.b16 %v881
    %v1082 = vunpack.c.l.b16 %v882
    %v1083 = vunpack.c.h.b16 %v882
    %v1084 = vunpack.c.l.b16 %v883
    %v1085 = vunpack.c.h.b16 %v883
    %v1086 = vunpack.c.l.b16 %v884
    %v1087 = vunpack.c.h.b16 %v884
    %v1088 = vunpack.c.l.b16 %v885
    %v1089 = vunpack.c.h.b16 %v885
    %v1090 = vunpack.c.l.b16 %v886
    %v1091 = vunpack.c.h.b16 %v886
    %v1092 = vpack.c.b16 %v966, %v964
    %v1093 = vpack.c.b16 %v967, %v965
    %v1094 = vpack.c.b16 %v970, %v968
    %v1095 = vpack.c.b16 %v971, %v969
    %v1096 = vpack.c.b16 %v974, %v972
    %v1097 = vpack.c.b16 %v975, %v973
    %v1098 = vpack.c.b16 %v978, %v976
    %v1099 = vpack.c.b16 %v979, %v977
    %v1100 = vpack.c.b16 %v982, %v980
    %v1101 = vpack.c.b16 %v983, %v981
    %v1102 = vpack.c.b16 %v986, %v984
    %v1103 = vpack.c.b16 %v987, %v985
    %v1104 = vpack.c.b16 %v990, %v988
    %v1105 = vpack.c.b16 %v991, %v989
    %v1106 = vpack.c.b16 %v994, %v992
    %v1107 = vpack.c.b16 %v995, %v993
    %v1108 = vpack.c.b16 %v998, %v996
    %v1109 = vpack.c.b16 %v999, %v997
    %v1110 = vpack.c.b16 %v1002, %v1000
    %v1111 = vpack.c.b16 %v1003, %v1001
    %v1112 = vpack.c.b16 %v1006, %v1004
    %v1113 = vpack.c.b16 %v1007, %v1005
    %v1114 = vpack.c.b16 %v1010, %v1008
    %v1115 = vpack.c.b16 %v1011, %v1009
    %v1116 = vpack.c.b16 %v1014, %v1012
    %v1117 = vpack.c.b16 %v1015, %v1013
    %v1118 = vpack.c.b16 %v1018, %v1016
    %v1119 = vpack.c.b16 %v1019, %v1017
    %v1120 = vpack.c.b16 %v1022, %v1020
    %v1121 = vpack.c.b16 %v1023, %v1021
    %v1122 = vpack.c.b16 %v1026, %v1024
    %v1123 = vpack.c.b16 %v1027, %v1025
    %v1124 = vpack.c.b16 %v1030, %v1028
    %v1125 = vpack.c.b16 %v1031, %v1029
    %v1126 = vpack.c.b16 %v1034, %v1032
    %v1127 = vpack.c.b16 %v1035, %v1033
    %v1128 = vpack.c.b16 %v1038, %v1036
    %v1129 = vpack.c.b16 %v1039, %v1037
    %v1130 = vpack.c.b16 %v1042, %v1040
    %v1131 = vpack.c.b16 %v1043, %v1041
    %v1132 = vpack.c.b16 %v1046, %v1044
    %v1133 = vpack.c.b16 %v1047, %v1045
    %v1134 = vpack.c.b16 %v1050, %v1048
    %v1135 = vpack.c.b16 %v1051, %v1049
    %v1136 = vpack.c.b16 %v1054, %v1052
    %v1137 = vpack.c.b16 %v1055, %v1053
    %v1138 = vpack.c.b16 %v1058, %v1056
    %v1139 = vpack.c.b16 %v1059, %v1057
    %v1140 = vpack.c.b16 %v1062, %v1060
    %v1141 = vpack.c.b16 %v1063, %v1061
    %v1142 = vpack.c.b16 %v1066, %v1064
    %v1143 = vpack.c.b16 %v1067, %v1065
    %v1144 = vpack.c.b16 %v1070, %v1068
    %v1145 = vpack.c.b16 %v1071, %v1069
    %v1146 = vpack.c.b16 %v1074, %v1072
    %v1147 = vpack.c.b16 %v1075, %v1073
    %v1148 = vpack.c.b16 %v1078, %v1076
    %v1149 = vpack.c.b16 %v1079, %v1077
    %v1150 = vpack.c.b16 %v1082, %v1080
    %v1151 = vpack.c.b16 %v1083, %v1081
    %v1152 = vpack.c.b16 %v1086, %v1084
    %v1153 = vpack.c.b16 %v1087, %v1085
    %v1154 = vpack.c.b16 %v1090, %v1088
    %v1155 = vpack.c.b16 %v1091, %v1089
    %1220 = vmatprep.subr.bf16.mxu0 %v1093
    %1221 = vmatpush1.bf16.msra.mxu0 %v1092
    %1222 = vmatprep.subr.bf16.mxu0 %v1095
    %1223 = vmatpush1.bf16.msra.mxu0 %v1094
    %1224 = vmatprep.subr.bf16.mxu0 %v1097
    %1225 = vmatpush1.bf16.msra.mxu0 %v1096
    %1226 = vmatprep.subr.bf16.mxu0 %v1099
    %1227 = vmatpush1.bf16.msra.mxu0 %v1098
    %1228 = vmatprep.subr.bf16.mxu0 %v1101
    %1229 = vmatpush1.bf16.msra.mxu0 %v1100
    %1230 = vmatprep.subr.bf16.mxu0 %v1103
    %1231 = vmatpush1.bf16.msra.mxu0 %v1102
    %1232 = vmatprep.subr.bf16.mxu0 %v1105
    %1233 = vmatpush1.bf16.msra.mxu0 %v1104
    %1234 = vmatprep.subr.bf16.mxu0 %v1107
    %1235 = vmatpush1.bf16.msra.mxu0 %v1106
    %1236 = vmatprep.subr.bf16.mxu0 %v1109
    %1237 = vmatpush1.bf16.msra.mxu0 %v1108
    %1238 = vmatprep.subr.bf16.mxu0 %v1111
    %1239 = vmatpush1.bf16.msra.mxu0 %v1110
    %1240 = vmatprep.subr.bf16.mxu0 %v1113
    %1241 = vmatpush1.bf16.msra.mxu0 %v1112
    %1242 = vmatprep.subr.bf16.mxu0 %v1115
    %1243 = vmatpush1.bf16.msra.mxu0 %v1114
    %1244 = vmatprep.subr.bf16.mxu0 %v1117
    %1245 = vmatpush1.bf16.msra.mxu0 %v1116
    %1246 = vmatprep.subr.bf16.mxu0 %v1119
    %1247 = vmatpush1.bf16.msra.mxu0 %v1118
    %1248 = vmatprep.subr.bf16.mxu0 %v1121
    %1249 = vmatpush1.bf16.msra.mxu0 %v1120
    %1250 = vmatprep.subr.bf16.mxu0 %v1123
    %1251 = vmatpush1.bf16.msra.mxu0 %v1122
    %1252 = vmatprep.mubr.bf16.mxu0 %v820
    %1253 = vmatmul.mubr.bf16.gmra.mrb[0].mxu0 %v819
    %v1254 = vpop.f32.mrb[0].mxu0
    %v1255 = vadd.f32 %v893, %v1254
    %v1256 = vpop.f32.mrb[0].mxu0
    %v1257 = vadd.f32 %v897, %v1256
    %v1258 = vpop.f32.mrb[0].mxu0
    %v1259 = vpop.f32.mrb[0].mxu0
    %1260 = vdwg.mxu0
    %1261 = vmatprep.subr.bf16.mxu0 %v1125
    %1262 = vmatpush1.bf16.msra.mxu0 %v1124
    %1263 = vmatprep.subr.bf16.mxu0 %v1127
    %1264 = vmatpush1.bf16.msra.mxu0 %v1126
    %1265 = vmatprep.subr.bf16.mxu0 %v1129
    %1266 = vmatpush1.bf16.msra.mxu0 %v1128
    %1267 = vmatprep.subr.bf16.mxu0 %v1131
    %1268 = vmatpush1.bf16.msra.mxu0 %v1130
    %1269 = vmatprep.subr.bf16.mxu0 %v1133
    %1270 = vmatpush1.bf16.msra.mxu0 %v1132
    %1271 = vmatprep.subr.bf16.mxu0 %v1135
    %1272 = vmatpush1.bf16.msra.mxu0 %v1134
    %1273 = vmatprep.subr.bf16.mxu0 %v1137
    %1274 = vmatpush1.bf16.msra.mxu0 %v1136
    %1275 = vmatprep.subr.bf16.mxu0 %v1139
    %1276 = vmatpush1.bf16.msra.mxu0 %v1138
    %1277 = vmatprep.subr.bf16.mxu0 %v1141
    %1278 = vmatpush1.bf16.msra.mxu0 %v1140
    %1279 = vmatprep.subr.bf16.mxu0 %v1143
    %1280 = vmatpush1.bf16.msra.mxu0 %v1142
    %1281 = vmatprep.subr.bf16.mxu0 %v1145
    %1282 = vmatpush1.bf16.msra.mxu0 %v1144
    %1283 = vmatprep.subr.bf16.mxu0 %v1147
    %1284 = vmatpush1.bf16.msra.mxu0 %v1146
    %1285 = vmatprep.subr.bf16.mxu0 %v1149
    %1286 = vmatpush1.bf16.msra.mxu0 %v1148
    %1287 = vmatprep.subr.bf16.mxu0 %v1151
    %1288 = vmatpush1.bf16.msra.mxu0 %v1150
    %1289 = vmatprep.subr.bf16.mxu0 %v1153
    %1290 = vmatpush1.bf16.msra.mxu0 %v1152
    %1291 = vmatprep.subr.bf16.mxu0 %v1155
    %1292 = vmatpush1.bf16.msra.mxu0 %v1154
    %1293 = vmatprep.mubr.bf16.mxu0 %v822
    %1294 = vmatmul.mubr.bf16.gmra.mrb[0].mxu0 %v821
    %v1295 = vpop.f32.mrb[0].mxu0
    %v1296 = vadd.f32 %v1255, %v1295
    %v1297 = vpop.f32.mrb[0].mxu0
    %v1298 = vadd.f32 %v1257, %v1297
    %v1299 = vpop.f32.mrb[0].mxu0
    %v1300 = vpop.f32.mrb[0].mxu0
    %1301 = vdwg.mxu0
    %v1302 = vmax.f32 %v1296, 0.0
    %v1303 = vmax.f32 %v1298, 0.0
    %v1304 = vpack.c.bf16 %v1302, %v1302
    %v1305 = vpack.c.bf16 %v1303, %v1303
    %v1306 = vld [vmem:[#allocation2 + $0x40] sm:$0xf]
    %v1307 = vld [vmem:[#allocation2 + $0x44] sm:$0xf]
    %v1308 = vld [vmem:[#allocation2 + $0x48] sm:$0xf]
    %v1309 = vld [vmem:[#allocation2 + $0x4c] sm:$0xf]
    %v1310 = vld [vmem:[#allocation2 + $0x50] sm:$0xf]
    %v1311 = vld [vmem:[#allocation2 + $0x54] sm:$0xf]
    %v1312 = vld [vmem:[#allocation2 + $0x58] sm:$0xf]
    %v1313 = vld [vmem:[#allocation2 + $0x5c] sm:$0xf]
    %v1314 = vld [vmem:[#allocation2 + $0x60] sm:$0xf]
    %v1315 = vld [vmem:[#allocation2 + $0x64] sm:$0xf]
    %v1316 = vld [vmem:[#allocation2 + $0x68] sm:$0xf]
    %v1317 = vld [vmem:[#allocation2 + $0x6c] sm:$0xf]
    %v1318 = vld [vmem:[#allocation2 + $0x70] sm:$0xf]
    %v1319 = vld [vmem:[#allocation2 + $0x74] sm:$0xf]
    %v1320 = vld [vmem:[#allocation2 + $0x78] sm:$0xf]
    %v1321 = vld [vmem:[#allocation2 + $0x7c] sm:$0xf]
    %v1322 = vld [vmem:[#allocation2 + $0x80] sm:$0xf]
    %v1323 = vld [vmem:[#allocation2 + $0x84] sm:$0xf]
    %v1324 = vld [vmem:[#allocation2 + $0x88] sm:$0xf]
    %v1325 = vld [vmem:[#allocation2 + $0x8c] sm:$0xf]
    %v1326 = vld [vmem:[#allocation2 + $0x90] sm:$0xf]
    %v1327 = vld [vmem:[#allocation2 + $0x94] sm:$0xf]
    %v1328 = vld [vmem:[#allocation2 + $0x98] sm:$0xf]
    %v1329 = vld [vmem:[#allocation2 + $0x9c] sm:$0xf]
    %v1330 = vld [vmem:[#allocation2 + $0xa0] sm:$0xf]
    %v1331 = vld [vmem:[#allocation2 + $0xa4] sm:$0xf]
    %v1332 = vld [vmem:[#allocation2 + $0xa8] sm:$0xf]
    %v1333 = vld [vmem:[#allocation2 + $0xac] sm:$0xf]
    %v1334 = vld [vmem:[#allocation2 + $0xb0] sm:$0xf]
    %v1335 = vld [vmem:[#allocation2 + $0xb4] sm:$0xf]
    %v1336 = vld [vmem:[#allocation2 + $0xb8] sm:$0xf]
    %v1337 = vld [vmem:[#allocation2 + $0xbc] sm:$0xf]
    %v1338 = vld [vmem:[%s4 + $0x4] ss:$0 sm:$0xff]
    %v1371 = vunpack.c.l.b16 %v1306
    %v1372 = vunpack.c.l.b16 %v1307
    %v1373 = vunpack.c.l.b16 %v1308
    %v1374 = vunpack.c.l.b16 %v1309
    %v1375 = vunpack.c.l.b16 %v1310
    %v1376 = vunpack.c.l.b16 %v1311
    %v1377 = vunpack.c.l.b16 %v1312
    %v1378 = vunpack.c.l.b16 %v1313
    %v1379 = vunpack.c.l.b16 %v1314
    %v1380 = vunpack.c.l.b16 %v1315
    %v1381 = vunpack.c.l.b16 %v1316
    %v1382 = vunpack.c.l.b16 %v1317
    %v1383 = vunpack.c.l.b16 %v1318
    %v1384 = vunpack.c.l.b16 %v1319
    %v1385 = vunpack.c.l.b16 %v1320
    %v1386 = vunpack.c.l.b16 %v1321
    %v1387 = vunpack.c.l.b16 %v1322
    %v1388 = vunpack.c.l.b16 %v1323
    %v1389 = vunpack.c.l.b16 %v1324
    %v1390 = vunpack.c.l.b16 %v1325
    %v1391 = vunpack.c.l.b16 %v1326
    %v1392 = vunpack.c.l.b16 %v1327
    %v1393 = vunpack.c.l.b16 %v1328
    %v1394 = vunpack.c.l.b16 %v1329
    %v1395 = vunpack.c.l.b16 %v1330
    %v1396 = vunpack.c.l.b16 %v1331
    %v1397 = vunpack.c.l.b16 %v1332
    %v1398 = vunpack.c.l.b16 %v1333
    %v1399 = vunpack.c.l.b16 %v1334
    %v1400 = vunpack.c.l.b16 %v1335
    %v1401 = vunpack.c.l.b16 %v1336
    %v1402 = vunpack.c.l.b16 %v1337
    %v1403 = vpack.c.b16 %v1372, %v1371
    %v1404 = vpack.c.b16 %v1374, %v1373
    %v1405 = vpack.c.b16 %v1376, %v1375
    %v1406 = vpack.c.b16 %v1378, %v1377
    %v1407 = vpack.c.b16 %v1380, %v1379
    %v1408 = vpack.c.b16 %v1382, %v1381
    %v1409 = vpack.c.b16 %v1384, %v1383
    %v1410 = vpack.c.b16 %v1386, %v1385
    %v1411 = vpack.c.b16 %v1388, %v1387
    %v1412 = vpack.c.b16 %v1390, %v1389
    %v1413 = vpack.c.b16 %v1392, %v1391
    %v1414 = vpack.c.b16 %v1394, %v1393
    %v1415 = vpack.c.b16 %v1396, %v1395
    %v1416 = vpack.c.b16 %v1398, %v1397
    %v1417 = vpack.c.b16 %v1400, %v1399
    %v1418 = vpack.c.b16 %v1402, %v1401
    %1435 = vmatprep.subr.bf16.mxu0 0
    %1436 = vmatpush1.bf16.msra.mxu0 %v1403
    %1437 = vmatprep.subr.bf16.mxu0 0
    %1438 = vmatpush1.bf16.msra.mxu0 %v1404
    %1439 = vmatprep.subr.bf16.mxu0 0
    %1440 = vmatpush1.bf16.msra.mxu0 %v1405
    %1441 = vmatprep.subr.bf16.mxu0 0
    %1442 = vmatpush1.bf16.msra.mxu0 %v1406
    %1443 = vmatprep.subr.bf16.mxu0 0
    %1444 = vmatpush1.bf16.msra.mxu0 %v1407
    %1445 = vmatprep.subr.bf16.mxu0 0
    %1446 = vmatpush1.bf16.msra.mxu0 %v1408
    %1447 = vmatprep.subr.bf16.mxu0 0
    %1448 = vmatpush1.bf16.msra.mxu0 %v1409
    %1449 = vmatprep.subr.bf16.mxu0 0
    %1450 = vmatpush1.bf16.msra.mxu0 %v1410
    %1451 = vmatprep.subr.bf16.mxu0 0
    %1452 = vmatpush1.bf16.msra.mxu0 %v1411
    %1453 = vmatprep.subr.bf16.mxu0 0
    %1454 = vmatpush1.bf16.msra.mxu0 %v1412
    %1455 = vmatprep.subr.bf16.mxu0 0
    %1456 = vmatpush1.bf16.msra.mxu0 %v1413
    %1457 = vmatprep.subr.bf16.mxu0 0
    %1458 = vmatpush1.bf16.msra.mxu0 %v1414
    %1459 = vmatprep.subr.bf16.mxu0 0
    %1460 = vmatpush1.bf16.msra.mxu0 %v1415
    %1461 = vmatprep.subr.bf16.mxu0 0
    %1462 = vmatpush1.bf16.msra.mxu0 %v1416
    %1463 = vmatprep.subr.bf16.mxu0 0
    %1464 = vmatpush1.bf16.msra.mxu0 %v1417
    %1465 = vmatprep.subr.bf16.mxu0 0
    %1466 = vmatpush1.bf16.msra.mxu0 %v1418
    %1467 = vmatprep.mubr.bf16.mxu0 %v1305
    %1468 = vmatmul.mubr.bf16.gmra.mrb[0].mxu0 %v1304
    %v1469 = vpop.f32.mrb[0].mxu0
    %v1470 = vadd.f32 %v1338, %v1469
    %v1471 = vpop.f32.mrb[0].mxu0
    %v1472 = vpop.f32.mrb[0].mxu0
    %v1473 = vpop.f32.mrb[0].mxu0
    %1474 = vdwg.mxu0
    %v1475 = vmax.f32 %v1470, 0.0
    %v1476 = vpack.c.bf16 %v1475, %v1475
    %v1477 = vld [vmem:[#allocation2 + $0xc0] sm:$0xf]
    %v1478 = vld [vmem:[#allocation2 + $0xc4] sm:$0xf]
    %v1479 = vld [vmem:[#allocation2 + $0xc8] sm:$0xf]
    %v1480 = vld [vmem:[#allocation2 + $0xcc] sm:$0xf]
    %v1481 = vld [vmem:[#allocation2 + $0xd0] sm:$0xf]
    %v1482 = vld [vmem:[#allocation2 + $0xd4] sm:$0xf]
    %v1483 = vld [vmem:[#allocation2 + $0xd8] sm:$0xf]
    %v1484 = vld [vmem:[#allocation2 + $0xdc] sm:$0xf]
    %v1485 = vld [vmem:[#allocation2 + $0xe0] sm:$0xf]
    %v1486 = vld [vmem:[#allocation2 + $0xe4] sm:$0xf]
    %v1487 = vld [vmem:[#allocation2 + $0xe8] sm:$0xf]
    %v1488 = vld [vmem:[#allocation2 + $0xec] sm:$0xf]
    %v1489 = vld [vmem:[#allocation2 + $0xf0] sm:$0xf]
    %v1490 = vld [vmem:[#allocation2 + $0xf4] sm:$0xf]
    %v1491 = vld [vmem:[#allocation2 + $0xf8] sm:$0xf]
    %v1492 = vld [vmem:[#allocation2 + $0xfc] sm:$0xf]
    %v1493 = vld [vmem:[%s4 + $0x5] ss:$0 sm:$0xff]
    %v1510 = vunpack.c.l.b16 %v1477
    %v1511 = vunpack.c.l.b16 %v1478
    %v1512 = vunpack.c.l.b16 %v1479
    %v1513 = vunpack.c.l.b16 %v1480
    %v1514 = vunpack.c.l.b16 %v1481
    %v1515 = vunpack.c.l.b16 %v1482
    %v1516 = vunpack.c.l.b16 %v1483
    %v1517 = vunpack.c.l.b16 %v1484
    %v1518 = vunpack.c.l.b16 %v1485
    %v1519 = vunpack.c.l.b16 %v1486
    %v1520 = vunpack.c.l.b16 %v1487
    %v1521 = vunpack.c.l.b16 %v1488
    %v1522 = vunpack.c.l.b16 %v1489
    %v1523 = vunpack.c.l.b16 %v1490
    %v1524 = vunpack.c.l.b16 %v1491
    %v1525 = vunpack.c.l.b16 %v1492
    %v1526 = vpack.c.b16 %v1511, %v1510
    %v1527 = vpack.c.b16 %v1513, %v1512
    %v1528 = vpack.c.b16 %v1515, %v1514
    %v1529 = vpack.c.b16 %v1517, %v1516
    %v1530 = vpack.c.b16 %v1519, %v1518
    %v1531 = vpack.c.b16 %v1521, %v1520
    %v1532 = vpack.c.b16 %v1523, %v1522
    %v1533 = vpack.c.b16 %v1525, %v1524
    %1542 = vmatprep.subr.bf16.mxu0 0
    %1543 = vmatpush1.bf16.msra.mxu0 %v1526
    %1544 = vmatprep.subr.bf16.mxu0 0
    %1545 = vmatpush1.bf16.msra.mxu0 %v1527
    %1546 = vmatprep.subr.bf16.mxu0 0
    %1547 = vmatpush1.bf16.msra.mxu0 %v1528
    %1548 = vmatprep.subr.bf16.mxu0 0
    %1549 = vmatpush1.bf16.msra.mxu0 %v1529
    %1550 = vmatprep.subr.bf16.mxu0 0
    %1551 = vmatpush1.bf16.msra.mxu0 %v1530
    %1552 = vmatprep.subr.bf16.mxu0 0
    %1553 = vmatpush1.bf16.msra.mxu0 %v1531
    %1554 = vmatprep.subr.bf16.mxu0 0
    %1555 = vmatpush1.bf16.msra.mxu0 %v1532
    %1556 = vmatprep.subr.bf16.mxu0 0
    %1557 = vmatpush1.bf16.msra.mxu0 %v1533
    %1558 = vmatprep.subr.bf16.mxu0 0
    %1559 = vmatpush1.bf16.msra.mxu0 0
    %1560 = vmatprep.subr.bf16.mxu0 0
    %1561 = vmatpush1.bf16.msra.mxu0 0
    %1562 = vmatprep.subr.bf16.mxu0 0
    %1563 = vmatpush1.bf16.msra.mxu0 0
    %1564 = vmatprep.subr.bf16.mxu0 0
    %1565 = vmatpush1.bf16.msra.mxu0 0
    %1566 = vmatprep.subr.bf16.mxu0 0
    %1567 = vmatpush1.bf16.msra.mxu0 0
    %1568 = vmatprep.subr.bf16.mxu0 0
    %1569 = vmatpush1.bf16.msra.mxu0 0
    %1570 = vmatprep.subr.bf16.mxu0 0
    %1571 = vmatpush1.bf16.msra.mxu0 0
    %1572 = vmatprep.subr.bf16.mxu0 0
    %1573 = vmatpush1.bf16.msra.mxu0 0
    %1574 = vmatprep.mubr.bf16.mxu0 0
    %1575 = vmatmul.mubr.bf16.gmra.mrb[0].mxu0 %v1476
    %v1576 = vpop.f32.mrb[0].mxu0
    %v1577 = vadd.f32 %v1493, %v1576
    %v1578 = vpop.f32.mrb[0].mxu0
    %v1579 = vpop.f32.mrb[0].mxu0
    %v1580 = vpop.f32.mrb[0].mxu0
    %1581 = vdwg.mxu0
    %v1582 = vrot.slane %v1577, 4
    %v1583 = vmax.f32 %v1577, %v1582
    %v1584 = vrot.slane %v1583, 2
    %v1585 = vmax.f32 %v1583, %v1584
    %v1586 = vrot.slane %v1585, 1
    %v1587 = vmax.f32 %v1585, %v1586
    %v1588 = vsub.f32 %v1577, %v1587
    %v1589 = vmul.f32 %v1588, 1.442695
    %v1590 = vpow.pop %v1589
    %v1591 = vrot.slane %v1590, 4
    %v1592 = vadd.f32 %v1590, %v1591
    %v1593 = vrot.slane %v1592, 2
    %v1594 = vadd.f32 %v1592, %v1593
    %v1595 = vrot.slane %v1594, 1
    %v1596 = vadd.f32 %v1594, %v1595
    %v1597 = vrcp.pop %v1596
    %v1598 = vmul.f32 %v1590, %v1597
    %1599 = vst [vmem:[#allocation8] sm:$0xff] %v1598
    // Predicated region
    $region34: #{mlp_forward.1} parent=1 // pred_check
      _
    $region35: #{mlp_forward.1} parent=1 // pred_check_branch
      %1601 = sbr.rel (0) target = $region37
    $region36: #{mlp_forward.1} parent=1 // pred_region
      %s1603 = ssub.s32 128, 128
      %1604 = vsyncadd [#allocation4], %s1603
      %s1606 = sshll.u32 [#allocation8], 4
      %s1607 = int_to_ptr.vmem [resolvable:$true] %s1606
      %1609 = dma.vmem_to_hbm [thread:$0]  %s1607, 128, %s5, [#allocation4]
    $region37: #{mlp_forward.1} parent=1 // pred_fallthru
      _
    // Predicated region
    $region38: #{mlp_forward.1} parent=1 // pred_check
      _
    $region39: #{mlp_forward.1} parent=1 // pred_check_branch
      %1611 = sbr.rel (0) target = $region41
    $region40: #{mlp_forward.1} parent=1 // pred_region
      %1612 = dma.done [#allocation4], 128
    $region41: #{mlp_forward.1} parent=1 // pred_fallthru
      _
    %1613 = vsyncpa [#allocation3], 1
    %1614 = vsyncpa [#allocation6], 1
    %1615 = vsyncpa [#allocation4], 1

</llo_original>
